<compile_context>
chip_gen: v7x
topology: tpu7x:2x2x1
jax: 0.10.0
libtpu: 0.0.40
codegen_flags: <defaults>
</compile_context>

<pallas_src>
import functools

import jax
import jax.numpy as jnp
from jax import lax
from jax.experimental import pallas as pl
from jax.experimental.pallas import tpu as pltpu


def _round_up(x, m):
    return ((x + m - 1) // m) * m


def _attention_kernel(s_true, q_ref, k_ref, v_ref, wq_ref, wk_ref, wv_ref,
                      out_ref, attn_ref):
    TB, S, H = k_ref.shape

    # Projections.  Weights are pre-transposed to (in, out) in the wrapper, so
    # these are plain (M,K)x(K,N) MXU matmuls (no per-step XLU transpose).
    qp = jnp.dot(q_ref[...], wq_ref[...],
                 preferred_element_type=jnp.float32)                      # (TB, H)

    # K/V projections flattened to one large matmul each (M = TB*S).  S is
    # padded to a multiple of 8 in the wrapper, so the reshape never crosses an
    # (8,128) tile boundary (stays a view -> no per-step VMEM copy of K/V).
    k_flat = k_ref[...].reshape(TB * S, H)
    v_flat = v_ref[...].reshape(TB * S, H)
    kp = jnp.dot(k_flat, wk_ref[...],
                 preferred_element_type=jnp.float32).reshape(TB, S, H)
    vp = jnp.dot(v_flat, wv_ref[...],
                 preferred_element_type=jnp.float32).reshape(TB, S, H)

    # scores[b, s] = sum_h qp[b, h] * kp[b, s, h]
    # VPU multiply + lane reduce: keeps the degenerate M=1 matmul off the MXU.
    scores = jnp.sum(qp[:, None, :] * kp, axis=-1)                        # (TB, S)

    if s_true != S:  # static: mask padded key positions
        col = lax.broadcasted_iota(jnp.int32, scores.shape, 1)
        scores = jnp.where(col < s_true, scores, -1e30)

    # Softmax over S in f32 (max-subtracted).  Exact normalization so the
    # returned attention weights sum to 1 (module contract).
    m = jnp.max(scores, axis=-1, keepdims=True)
    e = jnp.exp(scores - m)
    w = e / jnp.sum(e, axis=-1, keepdims=True)

    # out[b, h] = sum_s w[b, s] * vp[b, s, h]
    # VPU multiply + sublane reduce: keeps the K=S matmul off the MXU.
    out = jnp.sum(w[:, :, None] * vp, axis=1)                             # (TB, H)

    # 2-D, dense stores (the (B,1,*) shapes are restored in the wrapper).
    out_ref[...] = out.astype(out_ref.dtype)
    attn_ref[...] = w.astype(attn_ref.dtype)


def attention_forward(query, keys, values, wq, wk, wv, *,
                      block_b=None, compute_dtype=jnp.bfloat16):
    """query:(B,H) keys/values:(B,S,H); wq/wk/wv:(H,H) in PyTorch (out,in) layout."""
    B, H = query.shape
    _, S, _ = keys.shape
    out_dtype = query.dtype

    # ---- one-time wrapper-side layout / dtype prep --------------------------
    S_pad = max(8, _round_up(S, 8))
    if S_pad != S:
        pad = ((0, 0), (0, S_pad - S), (0, 0))
        keys = jnp.pad(keys, pad)
        values = jnp.pad(values, pad)

    # Pre-transpose weights to (in,out) and cast streamed operands to bf16.
    wq_t = wq.T.astype(compute_dtype)
    wk_t = wk.T.astype(compute_dtype)
    wv_t = wv.T.astype(compute_dtype)
    q_c = query.astype(compute_dtype)
    k_c = keys.astype(compute_dtype)
    v_c = values.astype(compute_dtype)

    # ---- VMEM-budget-derived batch tile --------------------------------------
    in_bytes = jnp.dtype(compute_dtype).itemsize
    try:
        vmem_cap = int(pltpu.get_tpu_info().vmem_capacity_bytes)
    except Exception:
        vmem_cap = 64 * 1024 * 1024            # conservative fallback (v7x per-TC)
    vmem_budget = int(vmem_cap * 0.6)

    weights_bytes = 3 * 2 * H * H * in_bytes           # 3 weights, double-buffered
    per_row_bytes = (
        2 * in_bytes * (2 * S_pad * H + H)              # q/k/v inputs, double-buffered
        + 2 * 4 * (H + S_pad)                           # f32 outputs, double-buffered
        + 4 * (2 * S_pad * H + 2 * H + 3 * S_pad)       # f32 in-kernel temporaries
    )

    if block_b is None:
        block_b = (vmem_budget - weights_bytes) // per_row_bytes
        block_b = max(8, (block_b // 8) * 8)
        block_b = min(block_b, 1024)   # step overhead fully amortized by ~1k rows
        if B >= 16:
            # keep >= 2 grid steps so both v7x TensorCores get work
            block_b = min(block_b, max(8, _round_up((B + 1) // 2, 8)))
    block_b = int(max(1, min(block_b, B)))
    if B >= 8:
        block_b = max(8, (block_b // 8) * 8)
    grid_b = pl.cdiv(B, block_b)
    # NOTE: for B % block_b != 0 the tail step runs its softmax over garbage
    # padded rows; that stays row-local and is never stored past B (benign).

    vmem_limit = int(min(vmem_cap,
                         max(32 * 1024 * 1024,
                             weights_bytes + block_b * per_row_bytes + (4 << 20))))

    out_shape = (
        jax.ShapeDtypeStruct((B, H), out_dtype),        # attended_output (dense 2-D)
        jax.ShapeDtypeStruct((B, S_pad), out_dtype),    # attention_weights (dense 2-D)
    )

    grid_spec = pltpu.PrefetchScalarGridSpec(
        num_scalar_prefetch=0,
        grid=(grid_b,),
        in_specs=[
            pl.BlockSpec((block_b, H), lambda b: (b, 0)),             # query
            pl.BlockSpec((block_b, S_pad, H), lambda b: (b, 0, 0)),   # keys
            pl.BlockSpec((block_b, S_pad, H), lambda b: (b, 0, 0)),   # values
            # Constant-index weight blocks.  For large H consider
            # pipeline_mode=pl.Buffered(1) to skip double-buffering them;
            # negligible at H=128.
            pl.BlockSpec((H, H), lambda b: (0, 0)),                   # Wq^T (in,out)
            pl.BlockSpec((H, H), lambda b: (0, 0)),                   # Wk^T (in,out)
            pl.BlockSpec((H, H), lambda b: (0, 0)),                   # Wv^T (in,out)
        ],
        out_specs=[
            pl.BlockSpec((block_b, H), lambda b: (b, 0)),
            pl.BlockSpec((block_b, S_pad), lambda b: (b, 0)),
        ],
    )

    out2d, attn2d = pl.pallas_call(
        functools.partial(_attention_kernel, S),
        out_shape=out_shape,
        grid_spec=grid_spec,
        compiler_params=pltpu.CompilerParams(
            # batch blocks shard across TensorCores where supported (v7x).
            dimension_semantics=("parallel",),
            vmem_limit_bytes=vmem_limit,
        ),
    )(q_c, k_c, v_c, wq_t, wk_t, wv_t)

    # Restore the module's (B,1,H)/(B,1,S) shapes outside the kernel.
    attended = out2d[:, None, :]
    attn = attn2d[:, :S][:, None, :]
    return attended, attn


def _reference(query, keys, values, wq, wk, wv):
    qp = (query @ wq.T)[:, None, :]            # (B,1,H)
    kp = keys @ wk.T                           # (B,S,H)
    vp = values @ wv.T                         # (B,S,H)
    scores = jnp.einsum("bqh,bsh->bqs", qp, kp)
    w = jax.nn.softmax(scores, axis=-1)
    out = jnp.einsum("bqs,bsh->bqh", w, vp)
    return out, w


if __name__ == "__main__":
    # Small shapes: H=128 keeps lanes aligned, S=10 exercises the S-padding /
    # masking path, B=16 gives a 2-step parallel grid.
    B, S, H = 16, 10, 128

    key = jax.random.PRNGKey(0)
    kq, kk, kv, kwq, kwk, kwv = jax.random.split(key, 6)

    query = jax.random.normal(kq, (B, H), dtype=jnp.float32)
    keys = jax.random.normal(kk, (B, S, H), dtype=jnp.float32)
    values = jax.random.normal(kv, (B, S, H), dtype=jnp.float32)

    # Deterministic nn.Linear-style init: U(-1/sqrt(H), 1/sqrt(H)), shape (out,in)
    bound = 1.0 / jnp.sqrt(jnp.float32(H))
    wq = jax.random.uniform(kwq, (H, H), jnp.float32, -bound, bound)
    wk = jax.random.uniform(kwk, (H, H), jnp.float32, -bound, bound)
    wv = jax.random.uniform(kwv, (H, H), jnp.float32, -bound, bound)

    out, attn = attention_forward(query, keys, values, wq, wk, wv)
    out = jax.block_until_ready(out)
    attn = jax.block_until_ready(attn)

    ref_out, ref_attn = _reference(query, keys, values, wq, wk, wv)
    assert out.shape == (B, 1, H) and attn.shape == (B, 1, S)
    # bf16-cast streamed operands -> ~1e-2-level deviation from the f32 reference.
    assert jnp.allclose(out, ref_out, atol=5e-2, rtol=5e-2), \
        float(jnp.max(jnp.abs(out - ref_out)))
    assert jnp.allclose(attn, ref_attn, atol=5e-2, rtol=5e-2), \
        float(jnp.max(jnp.abs(attn - ref_attn)))
    # Exact softmax normalization (division, not approx reciprocal).
    assert jnp.allclose(jnp.sum(attn, axis=-1), 1.0, atol=1e-3)

    print("KERNEL_OK")
</pallas_src>

<mosaic_0001>
module attributes {stable_mosaic.version = 11 : i64} {
  func.func @_attention_kernel(%arg0: i32, %arg1: memref<8x128xbf16, #tpu.memory_space<vmem>>, %arg2: memref<8x16x128xbf16, #tpu.memory_space<vmem>>, %arg3: memref<8x16x128xbf16, #tpu.memory_space<vmem>>, %arg4: memref<128x128xbf16, #tpu.memory_space<vmem>>, %arg5: memref<128x128xbf16, #tpu.memory_space<vmem>>, %arg6: memref<128x128xbf16, #tpu.memory_space<vmem>>, %arg7: memref<8x128xf32, #tpu.memory_space<vmem>>, %arg8: memref<8x16xf32, #tpu.memory_space<vmem>>) attributes {dimension_semantics = [#tpu.dimension_semantics<parallel>], iteration_bounds = array<i64: 2>, scalar_prefetch = 0 : i64, scratch_operands = 0 : i64, tpu.core_type = #tpu.core_type<tc>, window_params = [{transform_indices = @transform_0, window_bounds = array<i64: 8, 128>}, {transform_indices = @transform_1, window_bounds = array<i64: 8, 16, 128>}, {transform_indices = @transform_2, window_bounds = array<i64: 8, 16, 128>}, {pipeline_mode = #tpu.pipeline_mode<synchronous>, transform_indices = @transform_3, window_bounds = array<i64: 128, 128>}, {pipeline_mode = #tpu.pipeline_mode<synchronous>, transform_indices = @transform_4, window_bounds = array<i64: 128, 128>}, {pipeline_mode = #tpu.pipeline_mode<synchronous>, transform_indices = @transform_5, window_bounds = array<i64: 128, 128>}, {transform_indices = @transform_6, window_bounds = array<i64: 8, 128>}, {transform_indices = @transform_7, window_bounds = array<i64: 8, 16>}]} {
    %c0 = arith.constant 0 : index
    %c0_0 = arith.constant 0 : index
    %0 = vector.load %arg1[%c0, %c0_0] : memref<8x128xbf16, #tpu.memory_space<vmem>>, vector<8x128xbf16>
    %c0_1 = arith.constant 0 : index
    %c0_2 = arith.constant 0 : index
    %1 = vector.load %arg4[%c0_1, %c0_2] : memref<128x128xbf16, #tpu.memory_space<vmem>>, vector<128x128xbf16>
    %cst = arith.constant dense<0.000000e+00> : vector<8x128xf32>
    %2 = tpu.matmul %0, %1, %cst {dimension_numbers = #tpu.dot_dimension_numbers<[1], [0], [0], [1], [0, 0, 1, 1], [], []>} : vector<8x128xbf16>, vector<128x128xbf16>, vector<8x128xf32> -> vector<8x128xf32>
    %c0_3 = arith.constant 0 : index
    %c0_4 = arith.constant 0 : index
    %c0_5 = arith.constant 0 : index
    %3 = vector.load %arg2[%c0_3, %c0_4, %c0_5] : memref<8x16x128xbf16, #tpu.memory_space<vmem>>, vector<8x16x128xbf16>
    %4 = vector.shape_cast %3 : vector<8x16x128xbf16> to vector<128x128xbf16>
    %c0_6 = arith.constant 0 : index
    %c0_7 = arith.constant 0 : index
    %c0_8 = arith.constant 0 : index
    %5 = vector.load %arg3[%c0_6, %c0_7, %c0_8] : memref<8x16x128xbf16, #tpu.memory_space<vmem>>, vector<8x16x128xbf16>
    %6 = vector.shape_cast %5 : vector<8x16x128xbf16> to vector<128x128xbf16>
    %c0_9 = arith.constant 0 : index
    %c0_10 = arith.constant 0 : index
    %7 = vector.load %arg5[%c0_9, %c0_10] : memref<128x128xbf16, #tpu.memory_space<vmem>>, vector<128x128xbf16>
    %cst_11 = arith.constant dense<0.000000e+00> : vector<128x128xf32>
    %8 = tpu.matmul %4, %7, %cst_11 {dimension_numbers = #tpu.dot_dimension_numbers<[1], [0], [0], [1], [0, 0, 1, 1], [], []>} : vector<128x128xbf16>, vector<128x128xbf16>, vector<128x128xf32> -> vector<128x128xf32>
    %9 = vector.shape_cast %8 : vector<128x128xf32> to vector<8x16x128xf32>
    %c0_12 = arith.constant 0 : index
    %c0_13 = arith.constant 0 : index
    %10 = vector.load %arg6[%c0_12, %c0_13] : memref<128x128xbf16, #tpu.memory_space<vmem>>, vector<128x128xbf16>
    %cst_14 = arith.constant dense<0.000000e+00> : vector<128x128xf32>
    %11 = tpu.matmul %6, %10, %cst_14 {dimension_numbers = #tpu.dot_dimension_numbers<[1], [0], [0], [1], [0, 0, 1, 1], [], []>} : vector<128x128xbf16>, vector<128x128xbf16>, vector<128x128xf32> -> vector<128x128xf32>
    %12 = vector.shape_cast %11 : vector<128x128xf32> to vector<8x16x128xf32>
    %13 = vector.shape_cast %2 : vector<8x128xf32> to vector<8x1x128xf32>
    %14 = vector.broadcast %13 : vector<8x1x128xf32> to vector<8x16x128xf32>
    %15 = arith.mulf %14, %9 : vector<8x16x128xf32>
    %cst_15 = arith.constant dense<0.000000e+00> : vector<8x16xf32>
    %16 = vector.multi_reduction <add>, %15, %cst_15 [2] : vector<8x16x128xf32> to vector<8x16xf32>
    %17 = tpu.iota {dimensions = array<i32: 1>} : vector<8x16xi32>
    %c10_i32 = arith.constant 10 : i32
    %18 = vector.broadcast %c10_i32 : i32 to vector<8x16xi32>
    %19 = arith.cmpi slt, %17, %18 : vector<8x16xi32>
    %cst_16 = arith.constant -1.000000e+30 : f32
    %20 = vector.broadcast %cst_16 : f32 to vector<8x16xf32>
    %21 = arith.select %19, %16, %20 : vector<8x16xi1>, vector<8x16xf32>
    %cst_17 = arith.constant dense<0xFF800000> : vector<8xf32>
    %22 = vector.multi_reduction <maximumf>, %21, %cst_17 [1] : vector<8x16xf32> to vector<8xf32>
    %23 = vector.shape_cast %22 : vector<8xf32> to vector<8x1xf32>
    %24 = vector.broadcast %23 : vector<8x1xf32> to vector<8x16xf32>
    %25 = arith.subf %21, %24 : vector<8x16xf32>
    %26 = math.exp %25 : vector<8x16xf32>
    %cst_18 = arith.constant dense<0.000000e+00> : vector<8xf32>
    %27 = vector.multi_reduction <add>, %26, %cst_18 [1] : vector<8x16xf32> to vector<8xf32>
    %28 = vector.shape_cast %27 : vector<8xf32> to vector<8x1xf32>
    %29 = vector.broadcast %28 : vector<8x1xf32> to vector<8x16xf32>
    %30 = arith.divf %26, %29 : vector<8x16xf32>
    %31 = vector.shape_cast %30 : vector<8x16xf32> to vector<8x16x1xf32>
    %32 = vector.broadcast %31 : vector<8x16x1xf32> to vector<8x16x128xf32>
    %33 = arith.mulf %32, %12 : vector<8x16x128xf32>
    %cst_19 = arith.constant dense<0.000000e+00> : vector<8x128xf32>
    %34 = vector.multi_reduction <add>, %33, %cst_19 [1] : vector<8x16x128xf32> to vector<8x128xf32>
    %c0_20 = arith.constant 0 : index
    %c0_21 = arith.constant 0 : index
    %35 = vector.load %arg7[%c0_20, %c0_21] : memref<8x128xf32, #tpu.memory_space<vmem>>, vector<8x128xf32>
    tpu.vector_store %arg7[%c0_20, %c0_21], %34 {strides = array<i32>} : memref<8x128xf32, #tpu.memory_space<vmem>>, vector<8x128xf32>,
    %c0_22 = arith.constant 0 : index
    %c0_23 = arith.constant 0 : index
    %36 = vector.load %arg8[%c0_22, %c0_23] : memref<8x16xf32, #tpu.memory_space<vmem>>, vector<8x16xf32>
    tpu.vector_store %arg8[%c0_22, %c0_23], %30 {strides = array<i32>} : memref<8x16xf32, #tpu.memory_space<vmem>>, vector<8x16xf32>,
    return
  }
  func.func @transform_0(%arg0: i32) -> (i32, i32) {
    %c0_i32 = arith.constant 0 : i32
    %c0_i32_0 = arith.constant 0 : i32
    return %arg0, %c0_i32 : i32, i32
  }
  func.func @transform_1(%arg0: i32) -> (i32, i32, i32) {
    %c0_i32 = arith.constant 0 : i32
    %c0_i32_0 = arith.constant 0 : i32
    %c0_i32_1 = arith.constant 0 : i32
    return %arg0, %c0_i32, %c0_i32_0 : i32, i32, i32
  }
  func.func @transform_2(%arg0: i32) -> (i32, i32, i32) {
    %c0_i32 = arith.constant 0 : i32
    %c0_i32_0 = arith.constant 0 : i32
    %c0_i32_1 = arith.constant 0 : i32
    return %arg0, %c0_i32, %c0_i32_0 : i32, i32, i32
  }
  func.func @transform_3(%arg0: i32) -> (i32, i32) {
    %c0_i32 = arith.constant 0 : i32
    %c0_i32_0 = arith.constant 0 : i32
    %c0_i32_1 = arith.constant 0 : i32
    return %c0_i32, %c0_i32_0 : i32, i32
  }
  func.func @transform_4(%arg0: i32) -> (i32, i32) {
    %c0_i32 = arith.constant 0 : i32
    %c0_i32_0 = arith.constant 0 : i32
    %c0_i32_1 = arith.constant 0 : i32
    return %c0_i32, %c0_i32_0 : i32, i32
  }
  func.func @transform_5(%arg0: i32) -> (i32, i32) {
    %c0_i32 = arith.constant 0 : i32
    %c0_i32_0 = arith.constant 0 : i32
    %c0_i32_1 = arith.constant 0 : i32
    return %c0_i32, %c0_i32_0 : i32, i32
  }
  func.func @transform_6(%arg0: i32) -> (i32, i32) {
    %c0_i32 = arith.constant 0 : i32
    %c0_i32_0 = arith.constant 0 : i32
    return %arg0, %c0_i32 : i32, i32
  }
  func.func @transform_7(%arg0: i32) -> (i32, i32) {
    %c0_i32 = arith.constant 0 : i32
    %c0_i32_0 = arith.constant 0 : i32
    return %arg0, %c0_i32 : i32, i32
  }
}

</mosaic_0001>

<llo_original>
// kernel: tpu_custom_call.1
$region0: #{tpu_custom_call.1}
  #allocation0 [shape = 'u32[]', space=smem, size = 0x4, offset = 0x4, fixed_abs, tag = 'smem constant byte address 0x4 - core index']
  #allocation1 [shape = 'u32[144,128]{1,0:T(1,128)}', space=vmem, size = 0x12000, scoped, tag = 'internal scratch']
  %s0 = inlined_call_operand.hbm [shape: bf16[16,128], index: 0, kind: input, shape index: {}]
  %s1 = inlined_call_operand.hbm [shape: bf16[16,16,128], index: 1, kind: input, shape index: {}]
  %s2 = inlined_call_operand.hbm [shape: bf16[16,16,128], index: 2, kind: input, shape index: {}]
  %s3 = inlined_call_operand.hbm [shape: bf16[128,128], index: 3, kind: input, shape index: {}]
  %s4 = inlined_call_operand.hbm [shape: bf16[128,128], index: 4, kind: input, shape index: {}]
  %s5 = inlined_call_operand.hbm [shape: bf16[128,128], index: 5, kind: input, shape index: {}]
  %s6 = inlined_call_operand.hbm [shape: f32[16,128], index: 6, kind: output, shape index: {0}]
  %s7 = inlined_call_operand.hbm [shape: f32[16,16], index: 7, kind: output, shape index: {1}]
  %8 = xla_tuple %s6, %s7
  %s9 = sld [smem:[#allocation0]]
  $region89: #{tpu_custom_call.1} parent=0
    _
  %s11 = ssub.s32 1, %s9
  %s12 = scalar_select 0, %s11, %s9
  $region1: #{tpu_custom_call.1} parent=0
    #allocation2 [shape = 'u8[4096]{0}', space=vmem, size = 0x1000, scoped, tag = 'input window, operand 0']
    #allocation3 [shape = 's32[2]{0}', space=sflag, size = 0x8, scoped, tag = 'scoped memory for tpu_custom_call.1']
    #allocation4 [shape = 's32[2]{0}', space=sflag, size = 0x8, scoped, tag = 'scoped memory for tpu_custom_call.1']
    #allocation5 [shape = 'u8[65536]{0}', space=vmem, size = 0x10000, scoped, tag = 'input window, operand 1']
    #allocation6 [shape = 's32[2]{0}', space=sflag, size = 0x8, scoped, tag = 'scoped memory for tpu_custom_call.1']
    #allocation7 [shape = 'u8[65536]{0}', space=vmem, size = 0x10000, scoped, tag = 'input window, operand 2']
    #allocation8 [shape = 'u8[32768]{0}', space=vmem, size = 0x8000, scoped, tag = 'input window, operand 3, single buffered']
    #allocation9 [shape = 's32[1]{0}', space=sflag, size = 0x4, scoped, tag = 'scoped memory for tpu_custom_call.1']
    #allocation10 [shape = 'u8[32768]{0}', space=vmem, size = 0x8000, scoped, tag = 'input window, operand 4, single buffered']
    #allocation11 [shape = 'u8[32768]{0}', space=vmem, size = 0x8000, scoped, tag = 'input window, operand 5, single buffered']
    #allocation12 [shape = 's32[1]{0}', space=sflag, size = 0x4, scoped, tag = 'scoped memory for tpu_custom_call.1']
    #allocation13 [shape = 'u8[8192]{0}', space=vmem, size = 0x2000, scoped, tag = 'output window, operand 0']
    #allocation14 [shape = 'u8[8192]{0}', space=vmem, size = 0x2000, scoped, tag = 'output window, operand 1']
    #allocation15 [shape = 's32[2]{0}', space=sflag, size = 0x8, scoped, tag = 'scoped memory for tpu_custom_call.1']
    %13 = vsyncpa [#allocation3], 0
    %s14 = scalar_lea.sflag [#allocation3], 1
    %15 = vsyncpa %s14, 0
    %16 = vsyncpa [#allocation6], 0
    %s17 = scalar_lea.sflag [#allocation6], 1
    %18 = vsyncpa %s17, 0
    %19 = vsyncpa [#allocation9], 0
    %20 = vsyncpa [#allocation12], 0
    %21 = vsyncpa [#allocation4], 0
    %s22 = scalar_lea.sflag [#allocation4], 1
    %23 = vsyncpa %s22, 0
    %24 = vsyncpa [#allocation15], 0
    %s25 = scalar_lea.sflag [#allocation15], 1
    %26 = vsyncpa %s25, 0
    loop: start=0, step=1, limit=4
    $region2: #{tpu_custom_call.1} parent=1 // loop_pre_header
      _
    $region3: #{tpu_custom_call.1} parent=1 // loop_header
      %s28 = sphi 0, %s32
      %p29 = scmp.ge.s32.totalorder %s28, 4
      %s38 = sphi 0, %s40
      %s41 = sphi 0, %s38
      %s42 = sphi 0, %s41
      %s58 = sphi 0, %s42
      %s64 = sphi 0, %s66
      %s67 = sphi 0, %s64
      %s68 = sphi 0, %s67
      %s84 = sphi 0, %s68
      %s90 = sphi 0, %s92
      %s93 = sphi 0, %s90
      %s94 = sphi 0, %s93
      %s110 = sphi 0, %s94
      %s114 = sphi 0, %s114
      %s116 = sphi 0, %s114
      %s117 = sphi 0, %s116
      %s131 = sphi 0, %s117
      %s135 = sphi 0, %s135
      %s137 = sphi 0, %s135
      %s138 = sphi 0, %s137
      %s152 = sphi 0, %s138
      %s156 = sphi 0, %s156
      %s158 = sphi 0, %s156
      %s159 = sphi 0, %s158
      %s173 = sphi 0, %s159
      %s179 = sphi 0, %s181
      %s182 = sphi 0, %s179
      %s183 = sphi 0, %s182
      %s199 = sphi 0, %s183
      %s205 = sphi 0, %s207
      %s208 = sphi 0, %s205
      %s209 = sphi 0, %s208
      %s225 = sphi 0, %s209
    $region4: #{tpu_custom_call.1} parent=1 // loop_header_branch
      %31 = sbr.rel (%p29) target = $region8
    $region5: #{tpu_custom_call.1} parent=1 // loop_body
      %s33 = ssub.s32 %s28, 1
      %s34 = ssub.s32 %s28, 2
      %s35 = sadd.s32 %s28, 1
      %s36 = ssub.s32 %s28, %s35
      %p37 = scmp.eq.s32.totalorder %s36, 0
      %s39 = sadd.s32 %s38, 1
      %s40 = scalar_select %p37, %s38, %s39
      %p43 = pneg %p37
      %p44 = scmp.eq.s32.totalorder %s28, 1
      %p45 = por %p43, %p44
      %p46 = scmp.ne.s32.totalorder %s38, %s41
      %p47 = scmp.eq.s32.totalorder %s28, 0
      %p48 = por %p46, %p47
      %p49 = scmp.ne.s32.totalorder %s38, %s41
      %p50 = scmp.eq.s32.totalorder %s33, 1
      %p51 = por %p49, %p50
      %p52 = scmp.ne.s32.totalorder %s41, %s42
      %p53 = scmp.eq.s32.totalorder %s33, 0
      %p54 = por %p52, %p53
      %p55 = scmp.ne.s32.totalorder %s41, %s42
      %p56 = scmp.eq.s32.totalorder %s34, 1
      %p57 = por %p55, %p56
      %p59 = scmp.ne.s32.totalorder %s42, %s58
      %p60 = scmp.eq.s32.totalorder %s34, 0
      %p61 = por %p59, %p60
      %s62 = ssub.s32 %s28, %s35
      %p63 = scmp.eq.s32.totalorder %s62, 0
      %s65 = sadd.s32 %s64, 1
      %s66 = scalar_select %p63, %s64, %s65
      %p69 = pneg %p63
      %p70 = scmp.eq.s32.totalorder %s28, 1
      %p71 = por %p69, %p70
      %p72 = scmp.ne.s32.totalorder %s64, %s67
      %p73 = scmp.eq.s32.totalorder %s28, 0
      %p74 = por %p72, %p73
      %p75 = scmp.ne.s32.totalorder %s64, %s67
      %p76 = scmp.eq.s32.totalorder %s33, 1
      %p77 = por %p75, %p76
      %p78 = scmp.ne.s32.totalorder %s67, %s68
      %p79 = scmp.eq.s32.totalorder %s33, 0
      %p80 = por %p78, %p79
      %p81 = scmp.ne.s32.totalorder %s67, %s68
      %p82 = scmp.eq.s32.totalorder %s34, 1
      %p83 = por %p81, %p82
      %p85 = scmp.ne.s32.totalorder %s68, %s84
      %p86 = scmp.eq.s32.totalorder %s34, 0
      %p87 = por %p85, %p86
      %s88 = ssub.s32 %s28, %s35
      %p89 = scmp.eq.s32.totalorder %s88, 0
      %s91 = sadd.s32 %s90, 1
      %s92 = scalar_select %p89, %s90, %s91
      %p95 = pneg %p89
      %p96 = scmp.eq.s32.totalorder %s28, 1
      %p97 = por %p95, %p96
      %p98 = scmp.ne.s32.totalorder %s90, %s93
      %p99 = scmp.eq.s32.totalorder %s28, 0
      %p100 = por %p98, %p99
      %p101 = scmp.ne.s32.totalorder %s90, %s93
      %p102 = scmp.eq.s32.totalorder %s33, 1
      %p103 = por %p101, %p102
      %p104 = scmp.ne.s32.totalorder %s93, %s94
      %p105 = scmp.eq.s32.totalorder %s33, 0
      %p106 = por %p104, %p105
      %p107 = scmp.ne.s32.totalorder %s93, %s94
      %p108 = scmp.eq.s32.totalorder %s34, 1
      %p109 = por %p107, %p108
      %p111 = scmp.ne.s32.totalorder %s94, %s110
      %p112 = scmp.eq.s32.totalorder %s34, 0
      %p113 = por %p111, %p112
      %s115 = sadd.s32 %s114, 1
      %p118 = scmp.eq.s32.totalorder %s28, 1
      %p119 = scmp.ne.s32.totalorder %s114, %s116
      %p120 = scmp.eq.s32.totalorder %s28, 0
      %p121 = por %p119, %p120
      %p122 = scmp.ne.s32.totalorder %s114, %s116
      %p123 = scmp.eq.s32.totalorder %s33, 1
      %p124 = por %p122, %p123
      %p125 = scmp.ne.s32.totalorder %s116, %s117
      %p126 = scmp.eq.s32.totalorder %s33, 0
      %p127 = por %p125, %p126
      %p128 = scmp.ne.s32.totalorder %s116, %s117
      %p129 = scmp.eq.s32.totalorder %s34, 1
      %p130 = por %p128, %p129
      %p132 = scmp.ne.s32.totalorder %s117, %s131
      %p133 = scmp.eq.s32.totalorder %s34, 0
      %p134 = por %p132, %p133
      %s136 = sadd.s32 %s135, 1
      %p139 = scmp.eq.s32.totalorder %s28, 1
      %p140 = scmp.ne.s32.totalorder %s135, %s137
      %p141 = scmp.eq.s32.totalorder %s28, 0
      %p142 = por %p140, %p141
      %p143 = scmp.ne.s32.totalorder %s135, %s137
      %p144 = scmp.eq.s32.totalorder %s33, 1
      %p145 = por %p143, %p144
      %p146 = scmp.ne.s32.totalorder %s137, %s138
      %p147 = scmp.eq.s32.totalorder %s33, 0
      %p148 = por %p146, %p147
      %p149 = scmp.ne.s32.totalorder %s137, %s138
      %p150 = scmp.eq.s32.totalorder %s34, 1
      %p151 = por %p149, %p150
      %p153 = scmp.ne.s32.totalorder %s138, %s152
      %p154 = scmp.eq.s32.totalorder %s34, 0
      %p155 = por %p153, %p154
      %s157 = sadd.s32 %s156, 1
      %p160 = scmp.eq.s32.totalorder %s28, 1
      %p161 = scmp.ne.s32.totalorder %s156, %s158
      %p162 = scmp.eq.s32.totalorder %s28, 0
      %p163 = por %p161, %p162
      %p164 = scmp.ne.s32.totalorder %s156, %s158
      %p165 = scmp.eq.s32.totalorder %s33, 1
      %p166 = por %p164, %p165
      %p167 = scmp.ne.s32.totalorder %s158, %s159
      %p168 = scmp.eq.s32.totalorder %s33, 0
      %p169 = por %p167, %p168
      %p170 = scmp.ne.s32.totalorder %s158, %s159
      %p171 = scmp.eq.s32.totalorder %s34, 1
      %p172 = por %p170, %p171
      %p174 = scmp.ne.s32.totalorder %s159, %s173
      %p175 = scmp.eq.s32.totalorder %s34, 0
      %p176 = por %p174, %p175
      %s177 = ssub.s32 %s28, %s35
      %p178 = scmp.eq.s32.totalorder %s177, 0
      %s180 = sadd.s32 %s179, 1
      %s181 = scalar_select %p178, %s179, %s180
      %p184 = pneg %p178
      %p185 = scmp.eq.s32.totalorder %s28, 1
      %p186 = por %p184, %p185
      %p187 = scmp.ne.s32.totalorder %s179, %s182
      %p188 = scmp.eq.s32.totalorder %s28, 0
      %p189 = por %p187, %p188
      %p190 = scmp.ne.s32.totalorder %s179, %s182
      %p191 = scmp.eq.s32.totalorder %s33, 1
      %p192 = por %p190, %p191
      %p193 = scmp.ne.s32.totalorder %s182, %s183
      %p194 = scmp.eq.s32.totalorder %s33, 0
      %p195 = por %p193, %p194
      %p196 = scmp.ne.s32.totalorder %s182, %s183
      %p197 = scmp.eq.s32.totalorder %s34, 1
      %p198 = por %p196, %p197
      %p200 = scmp.ne.s32.totalorder %s183, %s199
      %p201 = scmp.eq.s32.totalorder %s34, 0
      %p202 = por %p200, %p201
      %s203 = ssub.s32 %s28, %s35
      %p204 = scmp.eq.s32.totalorder %s203, 0
      %s206 = sadd.s32 %s205, 1
      %s207 = scalar_select %p204, %s205, %s206
      %p210 = pneg %p204
      %p211 = scmp.eq.s32.totalorder %s28, 1
      %p212 = por %p210, %p211
      %p213 = scmp.ne.s32.totalorder %s205, %s208
      %p214 = scmp.eq.s32.totalorder %s28, 0
      %p215 = por %p213, %p214
      %p216 = scmp.ne.s32.totalorder %s205, %s208
      %p217 = scmp.eq.s32.totalorder %s33, 1
      %p218 = por %p216, %p217
      %p219 = scmp.ne.s32.totalorder %s208, %s209
      %p220 = scmp.eq.s32.totalorder %s33, 0
      %p221 = por %p219, %p220
      %p222 = scmp.ne.s32.totalorder %s208, %s209
      %p223 = scmp.eq.s32.totalorder %s34, 1
      %p224 = por %p222, %p223
      %p226 = scmp.ne.s32.totalorder %s209, %s225
      %p227 = scmp.eq.s32.totalorder %s34, 0
      %p228 = por %p226, %p227
      %p229 = scmp.le.s32.totalorder 1, %s28
      %p230 = scmp.lt.s32.totalorder %s28, 3
      %p231 = pnand %p229, %p230
      %p232 = pneg %p231
      // Predicated region
      $region9: #{tpu_custom_call.1} parent=5 // pred_check
        _
      $region10: #{tpu_custom_call.1} parent=5 // pred_check_branch
        %234 = sbr.rel (%p231) target = $region12
      $region11: #{tpu_custom_call.1} parent=5 // pred_region
        %s235 = ssub.s32 %s28, 1
        // Predicated region
        $region13: #{tpu_custom_call.1} parent=11 // pred_check
          %p236 = pneg %p127
        $region14: #{tpu_custom_call.1} parent=11 // pred_check_branch
          %238 = sbr.rel (%p236) target = $region16
        $region15: #{tpu_custom_call.1} parent=11 // pred_region
          %s240 = ssub.s32 1024, 1024
          %241 = vsyncadd [#allocation9], %s240
          %s242 = sshll.u32 [#allocation8], 4
          %s243 = int_to_ptr.vmem [resolvable:$true] %s242
          %248 = dma.hbm_to_vmem [thread:$0]  %s3, 1024, %s243, [#allocation9], 64, 64, 4
        $region16: #{tpu_custom_call.1} parent=11 // pred_fallthru
          _
        // Predicated region
        $region17: #{tpu_custom_call.1} parent=11 // pred_check
          %p249 = pneg %p148
        $region18: #{tpu_custom_call.1} parent=11 // pred_check_branch
          %251 = sbr.rel (%p249) target = $region20
        $region19: #{tpu_custom_call.1} parent=11 // pred_region
          %s253 = ssub.s32 1024, 1024
          %254 = vsyncadd [#allocation9], %s253
          %s255 = sshll.u32 [#allocation10], 4
          %s256 = int_to_ptr.vmem [resolvable:$true] %s255
          %261 = dma.hbm_to_vmem [thread:$0]  %s4, 1024, %s256, [#allocation9], 64, 64, 4
        $region20: #{tpu_custom_call.1} parent=11 // pred_fallthru
          _
        // Predicated region
        $region21: #{tpu_custom_call.1} parent=11 // pred_check
          %p262 = pneg %p169
        $region22: #{tpu_custom_call.1} parent=11 // pred_check_branch
          %264 = sbr.rel (%p262) target = $region24
        $region23: #{tpu_custom_call.1} parent=11 // pred_region
          %s266 = ssub.s32 1024, 1024
          %267 = vsyncadd [#allocation12], %s266
          %s268 = sshll.u32 [#allocation11], 4
          %s269 = int_to_ptr.vmem [resolvable:$true] %s268
          %274 = dma.hbm_to_vmem [thread:$0]  %s5, 1024, %s269, [#allocation12], 64, 64, 4
        $region24: #{tpu_custom_call.1} parent=11 // pred_fallthru
          _
      $region12: #{tpu_custom_call.1} parent=5 // pred_fallthru
        _
      %p275 = scmp.lt.s32.totalorder %s28, 2
      // Predicated region
      $region25: #{tpu_custom_call.1} parent=5 // pred_check
        %p276 = pneg %p275
      $region26: #{tpu_custom_call.1} parent=5 // pred_check_branch
        %278 = sbr.rel (%p276) target = $region28
      $region27: #{tpu_custom_call.1} parent=5 // pred_region
        // Predicated region
        $region29: #{tpu_custom_call.1} parent=27 // pred_check
          %p279 = pneg %p48
        $region30: #{tpu_custom_call.1} parent=27 // pred_check_branch
          %281 = sbr.rel (%p279) target = $region32
        $region31: #{tpu_custom_call.1} parent=27 // pred_region
          %s282 = sand.u32 %s38, 1
          %s283 = scalar_lea.sflag [#allocation3], %s282
          %s284 = sand.u32 %s38, 1
          %s285 = smul.addr %s284, 4
          %s286 = scalar_lea.vmem [#allocation2], %s285
          %s288 = ssub.s32 64, 64
          %289 = vsyncadd %s283, %s288
          %s290 = smul.addr %s28, 64
          %s291 = scalar_lea.hbm %s0, %s290
          %s293 = sshll.u32 %s286, 4
          %s294 = int_to_ptr.vmem [resolvable:$true] %s293
          %296 = dma.hbm_to_vmem [thread:$0]  %s291, 64, %s294, %s283
        $region32: #{tpu_custom_call.1} parent=27 // pred_fallthru
          _
        // Predicated region
        $region33: #{tpu_custom_call.1} parent=27 // pred_check
          %p297 = pneg %p74
        $region34: #{tpu_custom_call.1} parent=27 // pred_check_branch
          %299 = sbr.rel (%p297) target = $region36
        $region35: #{tpu_custom_call.1} parent=27 // pred_region
          %s300 = sand.u32 %s28, 1
          %s301 = scalar_lea.sflag [#allocation6], %s300
          %s302 = sand.u32 %s64, 1
          %s303 = smul.addr %s302, 64
          %s304 = scalar_lea.vmem [#allocation5], %s303
          %s305 = smul.u32 8, %s28
          %s307 = ssub.s32 1024, 1024
          %308 = vsyncadd %s301, %s307
          %s309 = smul.addr %s305, 2
          %s310 = smul.addr %s309, 64
          %s311 = scalar_lea.hbm %s1, %s310
          %s312 = sshll.u32 %s304, 4
          %s313 = int_to_ptr.vmem [resolvable:$true] %s312
          %318 = dma.hbm_to_vmem [thread:$0]  %s311, 1024, %s313, %s301, 64, 64, 4
        $region36: #{tpu_custom_call.1} parent=27 // pred_fallthru
          _
        // Predicated region
        $region37: #{tpu_custom_call.1} parent=27 // pred_check
          %p319 = pneg %p100
        $region38: #{tpu_custom_call.1} parent=27 // pred_check_branch
          %321 = sbr.rel (%p319) target = $region40
        $region39: #{tpu_custom_call.1} parent=27 // pred_region
          %s322 = sand.u32 %s28, 1
          %s323 = scalar_lea.sflag [#allocation6], %s322
          %s324 = sand.u32 %s90, 1
          %s325 = smul.addr %s324, 64
          %s326 = scalar_lea.vmem [#allocation7], %s325
          %s327 = smul.u32 8, %s28
          %s329 = ssub.s32 1024, 1024
          %330 = vsyncadd %s323, %s329
          %s331 = smul.addr %s327, 2
          %s332 = smul.addr %s331, 64
          %s333 = scalar_lea.hbm %s2, %s332
          %s334 = sshll.u32 %s326, 4
          %s335 = int_to_ptr.vmem [resolvable:$true] %s334
          %340 = dma.hbm_to_vmem [thread:$0]  %s333, 1024, %s335, %s323, 64, 64, 4
        $region40: #{tpu_custom_call.1} parent=27 // pred_fallthru
          _
      $region28: #{tpu_custom_call.1} parent=5 // pred_fallthru
        _
      %p341 = scmp.le.s32.totalorder 1, %s28
      %p342 = scmp.lt.s32.totalorder %s28, 3
      %p343 = pnand %p341, %p342
      %p344 = pneg %p343
      // Predicated region
      $region41: #{tpu_custom_call.1} parent=5 // pred_check
        _
      $region42: #{tpu_custom_call.1} parent=5 // pred_check_branch
        %346 = sbr.rel (%p343) target = $region44
      $region43: #{tpu_custom_call.1} parent=5 // pred_region
        %s347 = ssub.s32 %s28, 1
        %s348 = sand.u32 %s41, 1
        %s349 = scalar_lea.sflag [#allocation3], %s348
        %s350 = sand.u32 %s41, 1
        %s351 = smul.addr %s350, 4
        %s352 = scalar_lea.vmem [#allocation2], %s351
        // Predicated region
        $region45: #{tpu_custom_call.1} parent=43 // pred_check
          %p353 = pneg %p54
        $region46: #{tpu_custom_call.1} parent=43 // pred_check_branch
          %355 = sbr.rel (%p353) target = $region48
        $region47: #{tpu_custom_call.1} parent=43 // pred_region
          %356 = dma.done %s349, 64
        $region48: #{tpu_custom_call.1} parent=43 // pred_fallthru
          _
        %s357 = sand.u32 %s33, 1
        %s358 = scalar_lea.sflag [#allocation6], %s357
        %s359 = sand.u32 %s67, 1
        %s360 = smul.addr %s359, 64
        %s361 = scalar_lea.vmem [#allocation5], %s360
        // Predicated region
        $region49: #{tpu_custom_call.1} parent=43 // pred_check
          %p362 = pneg %p80
        $region50: #{tpu_custom_call.1} parent=43 // pred_check_branch
          %364 = sbr.rel (%p362) target = $region52
        $region51: #{tpu_custom_call.1} parent=43 // pred_region
          %365 = dma.done %s358, 1024
        $region52: #{tpu_custom_call.1} parent=43 // pred_fallthru
          _
        %s366 = sand.u32 %s33, 1
        %s367 = scalar_lea.sflag [#allocation6], %s366
        %s368 = sand.u32 %s93, 1
        %s369 = smul.addr %s368, 64
        %s370 = scalar_lea.vmem [#allocation7], %s369
        // Predicated region
        $region53: #{tpu_custom_call.1} parent=43 // pred_check
          %p371 = pneg %p106
        $region54: #{tpu_custom_call.1} parent=43 // pred_check_branch
          %373 = sbr.rel (%p371) target = $region56
        $region55: #{tpu_custom_call.1} parent=43 // pred_region
          %374 = dma.done %s367, 1024
        $region56: #{tpu_custom_call.1} parent=43 // pred_fallthru
          _
        // Predicated region
        $region57: #{tpu_custom_call.1} parent=43 // pred_check
          %p375 = pneg %p127
        $region58: #{tpu_custom_call.1} parent=43 // pred_check_branch
          %377 = sbr.rel (%p375) target = $region60
        $region59: #{tpu_custom_call.1} parent=43 // pred_region
          %378 = dma.done [#allocation9], 1024
        $region60: #{tpu_custom_call.1} parent=43 // pred_fallthru
          _
        // Predicated region
        $region61: #{tpu_custom_call.1} parent=43 // pred_check
          %p379 = pneg %p148
        $region62: #{tpu_custom_call.1} parent=43 // pred_check_branch
          %381 = sbr.rel (%p379) target = $region64
        $region63: #{tpu_custom_call.1} parent=43 // pred_region
          %382 = dma.done [#allocation9], 1024
        $region64: #{tpu_custom_call.1} parent=43 // pred_fallthru
          _
        // Predicated region
        $region65: #{tpu_custom_call.1} parent=43 // pred_check
          %p383 = pneg %p169
        $region66: #{tpu_custom_call.1} parent=43 // pred_check_branch
          %385 = sbr.rel (%p383) target = $region68
        $region67: #{tpu_custom_call.1} parent=43 // pred_region
          %386 = dma.done [#allocation12], 1024
        $region68: #{tpu_custom_call.1} parent=43 // pred_fallthru
          _
        %s387 = sand.u32 %s41, 1
        %s388 = scalar_lea.sflag [#allocation3], %s387
        %s389 = sand.u32 %s41, 1
        %s390 = smul.addr %s389, 4
        %s391 = scalar_lea.vmem [#allocation2], %s390
        %p392 = pneg %p54
        %p393 = pneg %p51
        %s394 = sand.u32 %s33, 1
        %s395 = scalar_lea.sflag [#allocation6], %s394
        %s396 = sand.u32 %s67, 1
        %s397 = smul.addr %s396, 64
        %s398 = scalar_lea.vmem [#allocation5], %s397
        %p399 = pneg %p80
        %p400 = pneg %p77
        %s401 = sand.u32 %s33, 1
        %s402 = scalar_lea.sflag [#allocation6], %s401
        %s403 = sand.u32 %s93, 1
        %s404 = smul.addr %s403, 64
        %s405 = scalar_lea.vmem [#allocation7], %s404
        %p406 = pneg %p106
        %p407 = pneg %p103
        %p408 = pneg %p127
        %p409 = pneg %p124
        %p410 = pneg %p148
        %p411 = pneg %p145
        %p412 = pneg %p169
        %p413 = pneg %p166
        %p414 = pneg %p195
        %p415 = pneg %p192
        %s416 = sand.u32 %s182, 1
        %s417 = scalar_lea.sflag [#allocation4], %s416
        %s418 = sand.u32 %s182, 1
        %s419 = smul.addr %s418, 8
        %s420 = scalar_lea.vmem [#allocation13], %s419
        %p421 = pneg %p221
        %p422 = pneg %p218
        %s423 = sand.u32 %s208, 1
        %s424 = scalar_lea.sflag [#allocation15], %s423
        %s425 = sand.u32 %s208, 1
        %s426 = smul.addr %s425, 8
        %s427 = scalar_lea.vmem [#allocation14], %s426
        %s428 = smul.u32 8, %s33
        %s429 = smul.u32 8, %s33
        %v431 = vld [vmem:[%s352] sm:$0xf]
        %v432 = vld [vmem:[#allocation8] sm:$0xf]
        %v433 = vld [vmem:[#allocation8 + $0x4] sm:$0xf]
        %v434 = vld [vmem:[#allocation8 + $0x8] sm:$0xf]
        %v435 = vld [vmem:[#allocation8 + $0xc] sm:$0xf]
        %v436 = vld [vmem:[#allocation8 + $0x10] sm:$0xf]
        %v437 = vld [vmem:[#allocation8 + $0x14] sm:$0xf]
        %v438 = vld [vmem:[#allocation8 + $0x18] sm:$0xf]
        %v439 = vld [vmem:[#allocation8 + $0x1c] sm:$0xf]
        %v440 = vld [vmem:[#allocation8 + $0x20] sm:$0xf]
        %v441 = vld [vmem:[#allocation8 + $0x24] sm:$0xf]
        %v442 = vld [vmem:[#allocation8 + $0x28] sm:$0xf]
        %v443 = vld [vmem:[#allocation8 + $0x2c] sm:$0xf]
        %v444 = vld [vmem:[#allocation8 + $0x30] sm:$0xf]
        %v445 = vld [vmem:[#allocation8 + $0x34] sm:$0xf]
        %v446 = vld [vmem:[#allocation8 + $0x38] sm:$0xf]
        %v447 = vld [vmem:[#allocation8 + $0x3c] sm:$0xf]
        %v464 = vunpack.c.l.b16 %v432
        %v465 = vunpack.c.l.b16 %v433
        %v466 = vunpack.c.l.b16 %v434
        %v467 = vunpack.c.l.b16 %v435
        %v468 = vunpack.c.l.b16 %v436
        %v469 = vunpack.c.l.b16 %v437
        %v470 = vunpack.c.l.b16 %v438
        %v471 = vunpack.c.l.b16 %v439
        %v472 = vunpack.c.l.b16 %v440
        %v473 = vunpack.c.l.b16 %v441
        %v474 = vunpack.c.l.b16 %v442
        %v475 = vunpack.c.l.b16 %v443
        %v476 = vunpack.c.l.b16 %v444
        %v477 = vunpack.c.l.b16 %v445
        %v478 = vunpack.c.l.b16 %v446
        %v479 = vunpack.c.l.b16 %v447
        %v480 = vpack.c.b16 %v465, %v464
        %v481 = vpack.c.b16 %v467, %v466
        %v482 = vpack.c.b16 %v469, %v468
        %v483 = vpack.c.b16 %v471, %v470
        %v484 = vpack.c.b16 %v473, %v472
        %v485 = vpack.c.b16 %v475, %v474
        %v486 = vpack.c.b16 %v477, %v476
        %v487 = vpack.c.b16 %v479, %v478
        %496 = vmatprep.subr.bf16.mxu0 0
        %497 = vmatpush1.bf16.msra.mxu0 %v480
        %498 = vmatprep.subr.bf16.mxu0 0
        %499 = vmatpush1.bf16.msra.mxu0 %v481
        %500 = vmatprep.subr.bf16.mxu0 0
        %501 = vmatpush1.bf16.msra.mxu0 %v482
        %502 = vmatprep.subr.bf16.mxu0 0
        %503 = vmatpush1.bf16.msra.mxu0 %v483
        %504 = vmatprep.subr.bf16.mxu0 0
        %505 = vmatpush1.bf16.msra.mxu0 %v484
        %506 = vmatprep.subr.bf16.mxu0 0
        %507 = vmatpush1.bf16.msra.mxu0 %v485
        %508 = vmatprep.subr.bf16.mxu0 0
        %509 = vmatpush1.bf16.msra.mxu0 %v486
        %510 = vmatprep.subr.bf16.mxu0 0
        %511 = vmatpush1.bf16.msra.mxu0 %v487
        %512 = vmatprep.subr.bf16.mxu0 0
        %513 = vmatpush1.bf16.msra.mxu0 0
        %514 = vmatprep.subr.bf16.mxu0 0
        %515 = vmatpush1.bf16.msra.mxu0 0
        %516 = vmatprep.subr.bf16.mxu0 0
        %517 = vmatpush1.bf16.msra.mxu0 0
        %518 = vmatprep.subr.bf16.mxu0 0
        %519 = vmatpush1.bf16.msra.mxu0 0
        %520 = vmatprep.subr.bf16.mxu0 0
        %521 = vmatpush1.bf16.msra.mxu0 0
        %522 = vmatprep.subr.bf16.mxu0 0
        %523 = vmatpush1.bf16.msra.mxu0 0
        %524 = vmatprep.subr.bf16.mxu0 0
        %525 = vmatpush1.bf16.msra.mxu0 0
        %526 = vmatprep.subr.bf16.mxu0 0
        %527 = vmatpush1.bf16.msra.mxu0 0
        %528 = vmatprep.mubr.bf16.mxu0 0
        %529 = vmatmul.mubr.bf16.gmra.mrb[0].mxu0 %v431
        %v530 = vpop.f32.mrb[0].mxu0
        %v531 = vadd.f32 0.0, %v530
        %v532 = vpop.f32.mrb[0].mxu0
        %v533 = vpop.f32.mrb[0].mxu0
        %v534 = vpop.f32.mrb[0].mxu0
        %535 = vdwg.mxu0
        %v536 = vld [vmem:[%s361] sm:$0xf]
        %v537 = vld [vmem:[%s361 + $0x4] sm:$0xf]
        %v538 = vld [vmem:[%s361 + $0x8] sm:$0xf]
        %v539 = vld [vmem:[%s361 + $0xc] sm:$0xf]
        %v540 = vld [vmem:[%s361 + $0x10] sm:$0xf]
        %v541 = vld [vmem:[%s361 + $0x14] sm:$0xf]
        %v542 = vld [vmem:[%s361 + $0x18] sm:$0xf]
        %v543 = vld [vmem:[%s361 + $0x1c] sm:$0xf]
        %v544 = vld [vmem:[%s361 + $0x20] sm:$0xf]
        %v545 = vld [vmem:[%s361 + $0x24] sm:$0xf]
        %v546 = vld [vmem:[%s361 + $0x28] sm:$0xf]
        %v547 = vld [vmem:[%s361 + $0x2c] sm:$0xf]
        %v548 = vld [vmem:[%s361 + $0x30] sm:$0xf]
        %v549 = vld [vmem:[%s361 + $0x34] sm:$0xf]
        %v550 = vld [vmem:[%s361 + $0x38] sm:$0xf]
        %v551 = vld [vmem:[%s361 + $0x3c] sm:$0xf]
        %v552 = vld [vmem:[%s370] sm:$0xf]
        %v553 = vld [vmem:[%s370 + $0x4] sm:$0xf]
        %v554 = vld [vmem:[%s370 + $0x8] sm:$0xf]
        %v555 = vld [vmem:[%s370 + $0xc] sm:$0xf]
        %v556 = vld [vmem:[%s370 + $0x10] sm:$0xf]
        %v557 = vld [vmem:[%s370 + $0x14] sm:$0xf]
        %v558 = vld [vmem:[%s370 + $0x18] sm:$0xf]
        %v559 = vld [vmem:[%s370 + $0x1c] sm:$0xf]
        %v560 = vld [vmem:[%s370 + $0x20] sm:$0xf]
        %v561 = vld [vmem:[%s370 + $0x24] sm:$0xf]
        %v562 = vld [vmem:[%s370 + $0x28] sm:$0xf]
        %v563 = vld [vmem:[%s370 + $0x2c] sm:$0xf]
        %v564 = vld [vmem:[%s370 + $0x30] sm:$0xf]
        %v565 = vld [vmem:[%s370 + $0x34] sm:$0xf]
        %v566 = vld [vmem:[%s370 + $0x38] sm:$0xf]
        %v567 = vld [vmem:[%s370 + $0x3c] sm:$0xf]
        %v568 = vld [vmem:[#allocation10] sm:$0xf]
        %v569 = vld [vmem:[#allocation10 + $0x4] sm:$0xf]
        %v570 = vld [vmem:[#allocation10 + $0x8] sm:$0xf]
        %v571 = vld [vmem:[#allocation10 + $0xc] sm:$0xf]
        %v572 = vld [vmem:[#allocation10 + $0x10] sm:$0xf]
        %v573 = vld [vmem:[#allocation10 + $0x14] sm:$0xf]
        %v574 = vld [vmem:[#allocation10 + $0x18] sm:$0xf]
        %v575 = vld [vmem:[#allocation10 + $0x1c] sm:$0xf]
        %v576 = vld [vmem:[#allocation10 + $0x20] sm:$0xf]
        %v577 = vld [vmem:[#allocation10 + $0x24] sm:$0xf]
        %v578 = vld [vmem:[#allocation10 + $0x28] sm:$0xf]
        %v579 = vld [vmem:[#allocation10 + $0x2c] sm:$0xf]
        %v580 = vld [vmem:[#allocation10 + $0x30] sm:$0xf]
        %v581 = vld [vmem:[#allocation10 + $0x34] sm:$0xf]
        %v582 = vld [vmem:[#allocation10 + $0x38] sm:$0xf]
        %v583 = vld [vmem:[#allocation10 + $0x3c] sm:$0xf]
        %v600 = vunpack.c.l.b16 %v536
        %v601 = vunpack.c.l.b16 %v537
        %v602 = vunpack.c.l.b16 %v538
        %v603 = vunpack.c.l.b16 %v539
        %v604 = vunpack.c.l.b16 %v540
        %v605 = vunpack.c.l.b16 %v541
        %v606 = vunpack.c.l.b16 %v542
        %v607 = vunpack.c.l.b16 %v543
        %v608 = vunpack.c.l.b16 %v544
        %v609 = vunpack.c.l.b16 %v545
        %v610 = vunpack.c.l.b16 %v546
        %v611 = vunpack.c.l.b16 %v547
        %v612 = vunpack.c.l.b16 %v548
        %v613 = vunpack.c.l.b16 %v549
        %v614 = vunpack.c.l.b16 %v550
        %v615 = vunpack.c.l.b16 %v551
        %v616 = vpack.c.b16 %v601, %v600
        %v617 = vpack.c.b16 %v603, %v602
        %v618 = vpack.c.b16 %v605, %v604
        %v619 = vpack.c.b16 %v607, %v606
        %v620 = vpack.c.b16 %v609, %v608
        %v621 = vpack.c.b16 %v611, %v610
        %v622 = vpack.c.b16 %v613, %v612
        %v623 = vpack.c.b16 %v615, %v614
        %v648 = vunpack.c.l.b16 %v568
        %v649 = vunpack.c.l.b16 %v569
        %v650 = vunpack.c.l.b16 %v570
        %v651 = vunpack.c.l.b16 %v571
        %v652 = vunpack.c.l.b16 %v572
        %v653 = vunpack.c.l.b16 %v573
        %v654 = vunpack.c.l.b16 %v574
        %v655 = vunpack.c.l.b16 %v575
        %v656 = vunpack.c.l.b16 %v576
        %v657 = vunpack.c.l.b16 %v577
        %v658 = vunpack.c.l.b16 %v578
        %v659 = vunpack.c.l.b16 %v579
        %v660 = vunpack.c.l.b16 %v580
        %v661 = vunpack.c.l.b16 %v581
        %v662 = vunpack.c.l.b16 %v582
        %v663 = vunpack.c.l.b16 %v583
        %v664 = vpack.c.b16 %v649, %v648
        %v665 = vpack.c.b16 %v651, %v650
        %v666 = vpack.c.b16 %v653, %v652
        %v667 = vpack.c.b16 %v655, %v654
        %v668 = vpack.c.b16 %v657, %v656
        %v669 = vpack.c.b16 %v659, %v658
        %v670 = vpack.c.b16 %v661, %v660
        %v671 = vpack.c.b16 %v663, %v662
        %680 = vmatprep.subr.bf16.mxu0 0
        %681 = vmatpush1.bf16.msra.mxu0 %v664
        %682 = vmatprep.subr.bf16.mxu0 0
        %683 = vmatpush1.bf16.msra.mxu0 %v665
        %684 = vmatprep.subr.bf16.mxu0 0
        %685 = vmatpush1.bf16.msra.mxu0 %v666
        %686 = vmatprep.subr.bf16.mxu0 0
        %687 = vmatpush1.bf16.msra.mxu0 %v667
        %688 = vmatprep.subr.bf16.mxu0 0
        %689 = vmatpush1.bf16.msra.mxu0 %v668
        %690 = vmatprep.subr.bf16.mxu0 0
        %691 = vmatpush1.bf16.msra.mxu0 %v669
        %692 = vmatprep.subr.bf16.mxu0 0
        %693 = vmatpush1.bf16.msra.mxu0 %v670
        %694 = vmatprep.subr.bf16.mxu0 0
        %695 = vmatpush1.bf16.msra.mxu0 %v671
        %696 = vmatprep.subr.bf16.mxu0 0
        %697 = vmatpush1.bf16.msra.mxu0 0
        %698 = vmatprep.subr.bf16.mxu0 0
        %699 = vmatpush1.bf16.msra.mxu0 0
        %700 = vmatprep.subr.bf16.mxu0 0
        %701 = vmatpush1.bf16.msra.mxu0 0
        %702 = vmatprep.subr.bf16.mxu0 0
        %703 = vmatpush1.bf16.msra.mxu0 0
        %704 = vmatprep.subr.bf16.mxu0 0
        %705 = vmatpush1.bf16.msra.mxu0 0
        %706 = vmatprep.subr.bf16.mxu0 0
        %707 = vmatpush1.bf16.msra.mxu0 0
        %708 = vmatprep.subr.bf16.mxu0 0
        %709 = vmatpush1.bf16.msra.mxu0 0
        %710 = vmatprep.subr.bf16.mxu0 0
        %711 = vmatpush1.bf16.msra.mxu0 0
        %712 = vmatprep.mubr.bf16.mxu0 0
        %713 = vmatmul.mubr.bf16.gmra.mrb[0].mxu0 %v616
        %v714 = vpop.f32.mrb[0].mxu0
        %v715 = vadd.f32 0.0, %v714
        %v716 = vpop.f32.mrb[0].mxu0
        %v717 = vpop.f32.mrb[0].mxu0
        %v718 = vadd.f32 0.0, %v717
        %v719 = vpop.f32.mrb[0].mxu0
        %720 = vmatprep.mubr.bf16.mxu0 0
        %721 = vmatmul.mubr.bf16.gmra.mrb[0].mxu0 %v617
        %v722 = vpop.f32.mrb[0].mxu0
        %v723 = vadd.f32 0.0, %v722
        %v724 = vpop.f32.mrb[0].mxu0
        %v725 = vpop.f32.mrb[0].mxu0
        %v726 = vadd.f32 0.0, %v725
        %v727 = vpop.f32.mrb[0].mxu0
        %728 = vmatprep.mubr.bf16.mxu0 0
        %729 = vmatmul.mubr.bf16.gmra.mrb[0].mxu0 %v618
        %v730 = vpop.f32.mrb[0].mxu0
        %v731 = vadd.f32 0.0, %v730
        %v732 = vpop.f32.mrb[0].mxu0
        %v733 = vpop.f32.mrb[0].mxu0
        %v734 = vadd.f32 0.0, %v733
        %v735 = vpop.f32.mrb[0].mxu0
        %736 = vmatprep.mubr.bf16.mxu0 0
        %737 = vmatmul.mubr.bf16.gmra.mrb[0].mxu0 %v619
        %v738 = vpop.f32.mrb[0].mxu0
        %v739 = vadd.f32 0.0, %v738
        %v740 = vpop.f32.mrb[0].mxu0
        %v741 = vpop.f32.mrb[0].mxu0
        %v742 = vadd.f32 0.0, %v741
        %v743 = vpop.f32.mrb[0].mxu0
        %744 = vmatprep.mubr.bf16.mxu0 0
        %745 = vmatmul.mubr.bf16.gmra.mrb[0].mxu0 %v620
        %v746 = vpop.f32.mrb[0].mxu0
        %v747 = vadd.f32 0.0, %v746
        %v748 = vpop.f32.mrb[0].mxu0
        %v749 = vpop.f32.mrb[0].mxu0
        %v750 = vadd.f32 0.0, %v749
        %v751 = vpop.f32.mrb[0].mxu0
        %752 = vmatprep.mubr.bf16.mxu0 0
        %753 = vmatmul.mubr.bf16.gmra.mrb[0].mxu0 %v621
        %v754 = vpop.f32.mrb[0].mxu0
        %v755 = vadd.f32 0.0, %v754
        %v756 = vpop.f32.mrb[0].mxu0
        %v757 = vpop.f32.mrb[0].mxu0
        %v758 = vadd.f32 0.0, %v757
        %v759 = vpop.f32.mrb[0].mxu0
        %760 = vmatprep.mubr.bf16.mxu0 0
        %761 = vmatmul.mubr.bf16.gmra.mrb[0].mxu0 %v622
        %v762 = vpop.f32.mrb[0].mxu0
        %v763 = vadd.f32 0.0, %v762
        %v764 = vpop.f32.mrb[0].mxu0
        %v765 = vpop.f32.mrb[0].mxu0
        %v766 = vadd.f32 0.0, %v765
        %v767 = vpop.f32.mrb[0].mxu0
        %768 = vmatprep.mubr.bf16.mxu0 0
        %769 = vmatmul.mubr.bf16.gmra.mrb[0].mxu0 %v623
        %v770 = vpop.f32.mrb[0].mxu0
        %v771 = vadd.f32 0.0, %v770
        %v772 = vpop.f32.mrb[0].mxu0
        %v773 = vpop.f32.mrb[0].mxu0
        %v774 = vadd.f32 0.0, %v773
        %v775 = vpop.f32.mrb[0].mxu0
        %776 = vdwg.mxu0
        %v777 = vld [vmem:[#allocation11] sm:$0xf]
        %v778 = vld [vmem:[#allocation11 + $0x4] sm:$0xf]
        %v779 = vld [vmem:[#allocation11 + $0x8] sm:$0xf]
        %v780 = vld [vmem:[#allocation11 + $0xc] sm:$0xf]
        %v781 = vld [vmem:[#allocation11 + $0x10] sm:$0xf]
        %v782 = vld [vmem:[#allocation11 + $0x14] sm:$0xf]
        %v783 = vld [vmem:[#allocation11 + $0x18] sm:$0xf]
        %v784 = vld [vmem:[#allocation11 + $0x1c] sm:$0xf]
        %v785 = vld [vmem:[#allocation11 + $0x20] sm:$0xf]
        %v786 = vld [vmem:[#allocation11 + $0x24] sm:$0xf]
        %v787 = vld [vmem:[#allocation11 + $0x28] sm:$0xf]
        %v788 = vld [vmem:[#allocation11 + $0x2c] sm:$0xf]
        %v789 = vld [vmem:[#allocation11 + $0x30] sm:$0xf]
        %v790 = vld [vmem:[#allocation11 + $0x34] sm:$0xf]
        %v791 = vld [vmem:[#allocation11 + $0x38] sm:$0xf]
        %v792 = vld [vmem:[#allocation11 + $0x3c] sm:$0xf]
        %v809 = vunpack.c.l.b16 %v552
        %v810 = vunpack.c.l.b16 %v553
        %v811 = vunpack.c.l.b16 %v554
        %v812 = vunpack.c.l.b16 %v555
        %v813 = vunpack.c.l.b16 %v556
        %v814 = vunpack.c.l.b16 %v557
        %v815 = vunpack.c.l.b16 %v558
        %v816 = vunpack.c.l.b16 %v559
        %v817 = vunpack.c.l.b16 %v560
        %v818 = vunpack.c.l.b16 %v561
        %v819 = vunpack.c.l.b16 %v562
        %v820 = vunpack.c.l.b16 %v563
        %v821 = vunpack.c.l.b16 %v564
        %v822 = vunpack.c.l.b16 %v565
        %v823 = vunpack.c.l.b16 %v566
        %v824 = vunpack.c.l.b16 %v567
        %v825 = vpack.c.b16 %v810, %v809
        %v826 = vpack.c.b16 %v812, %v811
        %v827 = vpack.c.b16 %v814, %v813
        %v828 = vpack.c.b16 %v816, %v815
        %v829 = vpack.c.b16 %v818, %v817
        %v830 = vpack.c.b16 %v820, %v819
        %v831 = vpack.c.b16 %v822, %v821
        %v832 = vpack.c.b16 %v824, %v823
        %v857 = vunpack.c.l.b16 %v777
        %v858 = vunpack.c.l.b16 %v778
        %v859 = vunpack.c.l.b16 %v779
        %v860 = vunpack.c.l.b16 %v780
        %v861 = vunpack.c.l.b16 %v781
        %v862 = vunpack.c.l.b16 %v782
        %v863 = vunpack.c.l.b16 %v783
        %v864 = vunpack.c.l.b16 %v784
        %v865 = vunpack.c.l.b16 %v785
        %v866 = vunpack.c.l.b16 %v786
        %v867 = vunpack.c.l.b16 %v787
        %v868 = vunpack.c.l.b16 %v788
        %v869 = vunpack.c.l.b16 %v789
        %v870 = vunpack.c.l.b16 %v790
        %v871 = vunpack.c.l.b16 %v791
        %v872 = vunpack.c.l.b16 %v792
        %v873 = vpack.c.b16 %v858, %v857
        %v874 = vpack.c.b16 %v860, %v859
        %v875 = vpack.c.b16 %v862, %v861
        %v876 = vpack.c.b16 %v864, %v863
        %v877 = vpack.c.b16 %v866, %v865
        %v878 = vpack.c.b16 %v868, %v867
        %v879 = vpack.c.b16 %v870, %v869
        %v880 = vpack.c.b16 %v872, %v871
        %889 = vmatprep.subr.bf16.mxu0 0
        %890 = vmatpush1.bf16.msra.mxu0 %v873
        %891 = vmatprep.subr.bf16.mxu0 0
        %892 = vmatpush1.bf16.msra.mxu0 %v874
        %893 = vmatprep.subr.bf16.mxu0 0
        %894 = vmatpush1.bf16.msra.mxu0 %v875
        %895 = vmatprep.subr.bf16.mxu0 0
        %896 = vmatpush1.bf16.msra.mxu0 %v876
        %897 = vmatprep.subr.bf16.mxu0 0
        %898 = vmatpush1.bf16.msra.mxu0 %v877
        %899 = vmatprep.subr.bf16.mxu0 0
        %900 = vmatpush1.bf16.msra.mxu0 %v878
        %901 = vmatprep.subr.bf16.mxu0 0
        %902 = vmatpush1.bf16.msra.mxu0 %v879
        %903 = vmatprep.subr.bf16.mxu0 0
        %904 = vmatpush1.bf16.msra.mxu0 %v880
        %905 = vmatprep.subr.bf16.mxu0 0
        %906 = vmatpush1.bf16.msra.mxu0 0
        %907 = vmatprep.subr.bf16.mxu0 0
        %908 = vmatpush1.bf16.msra.mxu0 0
        %909 = vmatprep.subr.bf16.mxu0 0
        %910 = vmatpush1.bf16.msra.mxu0 0
        %911 = vmatprep.subr.bf16.mxu0 0
        %912 = vmatpush1.bf16.msra.mxu0 0
        %913 = vmatprep.subr.bf16.mxu0 0
        %914 = vmatpush1.bf16.msra.mxu0 0
        %915 = vmatprep.subr.bf16.mxu0 0
        %916 = vmatpush1.bf16.msra.mxu0 0
        %917 = vmatprep.subr.bf16.mxu0 0
        %918 = vmatpush1.bf16.msra.mxu0 0
        %919 = vmatprep.subr.bf16.mxu0 0
        %920 = vmatpush1.bf16.msra.mxu0 0
        %921 = vmatprep.mubr.bf16.mxu0 0
        %922 = vmatmul.mubr.bf16.gmra.mrb[0].mxu0 %v825
        %v923 = vpop.f32.mrb[0].mxu0
        %v924 = vadd.f32 0.0, %v923
        %v925 = vpop.f32.mrb[0].mxu0
        %v926 = vpop.f32.mrb[0].mxu0
        %v927 = vadd.f32 0.0, %v926
        %v928 = vpop.f32.mrb[0].mxu0
        %929 = vmatprep.mubr.bf16.mxu0 0
        %930 = vmatmul.mubr.bf16.gmra.mrb[0].mxu0 %v826
        %v931 = vpop.f32.mrb[0].mxu0
        %v932 = vadd.f32 0.0, %v931
        %v933 = vpop.f32.mrb[0].mxu0
        %v934 = vpop.f32.mrb[0].mxu0
        %v935 = vadd.f32 0.0, %v934
        %v936 = vpop.f32.mrb[0].mxu0
        %937 = vmatprep.mubr.bf16.mxu0 0
        %938 = vmatmul.mubr.bf16.gmra.mrb[0].mxu0 %v827
        %v939 = vpop.f32.mrb[0].mxu0
        %v940 = vadd.f32 0.0, %v939
        %v941 = vpop.f32.mrb[0].mxu0
        %v942 = vpop.f32.mrb[0].mxu0
        %v943 = vadd.f32 0.0, %v942
        %v944 = vpop.f32.mrb[0].mxu0
        %945 = vmatprep.mubr.bf16.mxu0 0
        %946 = vmatmul.mubr.bf16.gmra.mrb[0].mxu0 %v828
        %v947 = vpop.f32.mrb[0].mxu0
        %v948 = vadd.f32 0.0, %v947
        %v949 = vpop.f32.mrb[0].mxu0
        %v950 = vpop.f32.mrb[0].mxu0
        %v951 = vadd.f32 0.0, %v950
        %v952 = vpop.f32.mrb[0].mxu0
        %953 = vmatprep.mubr.bf16.mxu0 0
        %954 = vmatmul.mubr.bf16.gmra.mrb[0].mxu0 %v829
        %v955 = vpop.f32.mrb[0].mxu0
        %v956 = vadd.f32 0.0, %v955
        %v957 = vpop.f32.mrb[0].mxu0
        %v958 = vpop.f32.mrb[0].mxu0
        %v959 = vadd.f32 0.0, %v958
        %v960 = vpop.f32.mrb[0].mxu0
        %961 = vmatprep.mubr.bf16.mxu0 0
        %962 = vmatmul.mubr.bf16.gmra.mrb[0].mxu0 %v830
        %v963 = vpop.f32.mrb[0].mxu0
        %v964 = vadd.f32 0.0, %v963
        %v965 = vpop.f32.mrb[0].mxu0
        %v966 = vpop.f32.mrb[0].mxu0
        %v967 = vadd.f32 0.0, %v966
        %v968 = vpop.f32.mrb[0].mxu0
        %969 = vmatprep.mubr.bf16.mxu0 0
        %970 = vmatmul.mubr.bf16.gmra.mrb[0].mxu0 %v831
        %v971 = vpop.f32.mrb[0].mxu0
        %v972 = vadd.f32 0.0, %v971
        %v973 = vpop.f32.mrb[0].mxu0
        %v974 = vpop.f32.mrb[0].mxu0
        %v975 = vadd.f32 0.0, %v974
        %v976 = vpop.f32.mrb[0].mxu0
        %977 = vmatprep.mubr.bf16.mxu0 0
        %978 = vmatmul.mubr.bf16.gmra.mrb[0].mxu0 %v832
        %v979 = vpop.f32.mrb[0].mxu0
        %v980 = vadd.f32 0.0, %v979
        %v981 = vpop.f32.mrb[0].mxu0
        %v982 = vpop.f32.mrb[0].mxu0
        %v983 = vadd.f32 0.0, %v982
        %v984 = vpop.f32.mrb[0].mxu0
        %985 = vdwg.mxu0
        %v987 = vcombine.high %v531, %v531
        %v989 = vunpack.c.l.s4 1966171168
        %v990 = vunpack.c.0.s8 %v989
        %v991 = vlaneseq
        %v992 = vshrl.u32 %v991, 7
        %v993 = vsub.s32 %v990, %v992
        %v994 = vrot.slane %v531, %v993
        %v996 = vunpack.c.l.s4 1966171168
        %v997 = vunpack.c.0.s8 %v996
        %v998 = vlaneseq
        %v999 = vshrl.u32 %v998, 7
        %v1000 = vsub.s32 %v997, %v999
        %v1001 = vrot.slane %v987, %v1000
        %v1002 = vcombine.high %v994, %v994
        %v1003 = vcombine.high %v1001, %v1001
        %v1005 = vunpack.c.l.s4 1966171168
        %v1006 = vunpack.c.0.s8 %v1005
        %v1007 = vlaneseq
        %v1008 = vshrl.u32 %v1007, 7
        %v1009 = vsub.s32 %v1006, %v1008
        %v1010 = vrot.slane %v994, %v1009
        %v1012 = vunpack.c.l.s4 1966171168
        %v1013 = vunpack.c.0.s8 %v1012
        %v1014 = vlaneseq
        %v1015 = vshrl.u32 %v1014, 7
        %v1016 = vsub.s32 %v1013, %v1015
        %v1017 = vrot.slane %v1001, %v1016
        %v1019 = vunpack.c.l.s4 1966171168
        %v1020 = vunpack.c.0.s8 %v1019
        %v1021 = vlaneseq
        %v1022 = vshrl.u32 %v1021, 7
        %v1023 = vsub.s32 %v1020, %v1022
        %v1024 = vrot.slane %v1002, %v1023
        %v1026 = vunpack.c.l.s4 1966171168
        %v1027 = vunpack.c.0.s8 %v1026
        %v1028 = vlaneseq
        %v1029 = vshrl.u32 %v1028, 7
        %v1030 = vsub.s32 %v1027, %v1029
        %v1031 = vrot.slane %v1003, %v1030
        %v1032 = vcombine.high %v1010, %v1010
        %v1033 = vcombine.high %v1017, %v1017
        %v1034 = vcombine.high %v1024, %v1024
        %v1035 = vcombine.high %v1031, %v1031
        %v1036 = vlaneseq
        %v1037 = vshrl.u32 %v1036, 7
        %v1038 = vsub.s32 0, %v1037
        %v1039 = vrot.slane %v1010, %v1038
        %v1040 = vlaneseq
        %v1041 = vshrl.u32 %v1040, 7
        %v1042 = vsub.s32 0, %v1041
        %v1043 = vrot.slane %v1024, %v1042
        %v1044 = vlaneseq
        %v1045 = vshrl.u32 %v1044, 7
        %v1046 = vsub.s32 0, %v1045
        %v1047 = vrot.slane %v1032, %v1046
        %v1048 = vlaneseq
        %v1049 = vshrl.u32 %v1048, 7
        %v1050 = vsub.s32 0, %v1049
        %v1051 = vrot.slane %v1034, %v1050
        %v1052 = vlaneseq
        %v1053 = vshrl.u32 %v1052, 7
        %v1054 = vsub.s32 0, %v1053
        %v1055 = vrot.slane %v1017, %v1054
        %v1056 = vlaneseq
        %v1057 = vshrl.u32 %v1056, 7
        %v1058 = vsub.s32 0, %v1057
        %v1059 = vrot.slane %v1031, %v1058
        %v1060 = vlaneseq
        %v1061 = vshrl.u32 %v1060, 7
        %v1062 = vsub.s32 0, %v1061
        %v1063 = vrot.slane %v1033, %v1062
        %v1064 = vlaneseq
        %v1065 = vshrl.u32 %v1064, 7
        %v1066 = vsub.s32 0, %v1065
        %v1067 = vrot.slane %v1035, %v1066
        %v1076 = vmul.f32 %v1039, %v715
        %v1077 = vmul.f32 %v1039, %v718
        %v1078 = vmul.f32 %v1043, %v723
        %v1079 = vmul.f32 %v1043, %v726
        %v1080 = vmul.f32 %v1047, %v731
        %v1081 = vmul.f32 %v1047, %v734
        %v1082 = vmul.f32 %v1051, %v739
        %v1083 = vmul.f32 %v1051, %v742
        %v1084 = vmul.f32 %v1055, %v747
        %v1085 = vmul.f32 %v1055, %v750
        %v1086 = vmul.f32 %v1059, %v755
        %v1087 = vmul.f32 %v1059, %v758
        %v1088 = vmul.f32 %v1063, %v763
        %v1089 = vmul.f32 %v1063, %v766
        %v1090 = vmul.f32 %v1067, %v771
        %v1091 = vmul.f32 %v1067, %v774
        %1092 = vadd.xlane.f32.xlu0 %v1076
        %v1093 = vpop.xlane.xlu0 %1092
        %1094 = vadd.xlane.f32.xlu0 %v1077
        %v1095 = vpop.xlane.xlu0 %1094
        %1096 = vadd.xlane.f32.xlu0 %v1078
        %v1097 = vpop.xlane.xlu0 %1096
        %1098 = vadd.xlane.f32.xlu0 %v1079
        %v1099 = vpop.xlane.xlu0 %1098
        %1100 = vadd.xlane.f32.xlu0 %v1080
        %v1101 = vpop.xlane.xlu0 %1100
        %1102 = vadd.xlane.f32.xlu0 %v1081
        %v1103 = vpop.xlane.xlu0 %1102
        %1104 = vadd.xlane.f32.xlu0 %v1082
        %v1105 = vpop.xlane.xlu0 %1104
        %1106 = vadd.xlane.f32.xlu0 %v1083
        %v1107 = vpop.xlane.xlu0 %1106
        %1108 = vadd.xlane.f32.xlu0 %v1084
        %v1109 = vpop.xlane.xlu0 %1108
        %1110 = vadd.xlane.f32.xlu0 %v1085
        %v1111 = vpop.xlane.xlu0 %1110
        %1112 = vadd.xlane.f32.xlu0 %v1086
        %v1113 = vpop.xlane.xlu0 %1112
        %1114 = vadd.xlane.f32.xlu0 %v1087
        %v1115 = vpop.xlane.xlu0 %1114
        %1116 = vadd.xlane.f32.xlu0 %v1088
        %v1117 = vpop.xlane.xlu0 %1116
        %1118 = vadd.xlane.f32.xlu0 %v1089
        %v1119 = vpop.xlane.xlu0 %1118
        %1120 = vadd.xlane.f32.xlu0 %v1090
        %v1121 = vpop.xlane.xlu0 %1120
        %1122 = vadd.xlane.f32.xlu0 %v1091
        %v1123 = vpop.xlane.xlu0 %1122
        %v1124 = vlaneseq
        %v1125 = vand.u32 %v1124, 127
        %vm1126 = vcmp.lt.s32.totalorder %v1125, 10
        %v1143 = vlaneseq
        %v1144 = vshrl.u32 %v1143, 7
        %v1145 = vsub.s32 %v1125, %v1144
        %v1146 = vrot.slane %v1093, %v1145
        %v1147 = vadd.s32 %v1125, 4294967288
        %v1148 = vlaneseq
        %v1149 = vshrl.u32 %v1148, 7
        %v1150 = vsub.s32 %v1147, %v1149
        %v1151 = vrot.slane %v1095, %v1150
        %vm1152 = vcmask 130112
        %v1153 = vsel %vm1152, %v1151, %v1146
        %v1154 = vlaneseq
        %v1155 = vshrl.u32 %v1154, 7
        %v1156 = vsub.s32 %v1125, %v1155
        %v1157 = vrot.slane %v1097, %v1156
        %v1158 = vlaneseq
        %v1159 = vshrl.u32 %v1158, 7
        %v1160 = vsub.s32 %v1147, %v1159
        %v1161 = vrot.slane %v1099, %v1160
        %v1162 = vsel %vm1152, %v1161, %v1157
        %v1163 = vlaneseq
        %v1164 = vshrl.u32 %v1163, 7
        %v1165 = vsub.s32 %v1125, %v1164
        %v1166 = vrot.slane %v1101, %v1165
        %v1167 = vlaneseq
        %v1168 = vshrl.u32 %v1167, 7
        %v1169 = vsub.s32 %v1147, %v1168
        %v1170 = vrot.slane %v1103, %v1169
        %v1171 = vsel %vm1152, %v1170, %v1166
        %v1172 = vlaneseq
        %v1173 = vshrl.u32 %v1172, 7
        %v1174 = vsub.s32 %v1125, %v1173
        %v1175 = vrot.slane %v1105, %v1174
        %v1176 = vlaneseq
        %v1177 = vshrl.u32 %v1176, 7
        %v1178 = vsub.s32 %v1147, %v1177
        %v1179 = vrot.slane %v1107, %v1178
        %v1180 = vsel %vm1152, %v1179, %v1175
        %v1181 = vlaneseq
        %v1182 = vshrl.u32 %v1181, 7
        %v1183 = vsub.s32 %v1125, %v1182
        %v1184 = vrot.slane %v1109, %v1183
        %v1185 = vlaneseq
        %v1186 = vshrl.u32 %v1185, 7
        %v1187 = vsub.s32 %v1147, %v1186
        %v1188 = vrot.slane %v1111, %v1187
        %v1189 = vsel %vm1152, %v1188, %v1184
        %v1190 = vlaneseq
        %v1191 = vshrl.u32 %v1190, 7
        %v1192 = vsub.s32 %v1125, %v1191
        %v1193 = vrot.slane %v1113, %v1192
        %v1194 = vlaneseq
        %v1195 = vshrl.u32 %v1194, 7
        %v1196 = vsub.s32 %v1147, %v1195
        %v1197 = vrot.slane %v1115, %v1196
        %v1198 = vsel %vm1152, %v1197, %v1193
        %v1199 = vlaneseq
        %v1200 = vshrl.u32 %v1199, 7
        %v1201 = vsub.s32 %v1125, %v1200
        %v1202 = vrot.slane %v1117, %v1201
        %v1203 = vlaneseq
        %v1204 = vshrl.u32 %v1203, 7
        %v1205 = vsub.s32 %v1147, %v1204
        %v1206 = vrot.slane %v1119, %v1205
        %v1207 = vsel %vm1152, %v1206, %v1202
        %v1208 = vlaneseq
        %v1209 = vshrl.u32 %v1208, 7
        %v1210 = vsub.s32 %v1125, %v1209
        %v1211 = vrot.slane %v1121, %v1210
        %v1212 = vlaneseq
        %v1213 = vshrl.u32 %v1212, 7
        %v1214 = vsub.s32 %v1147, %v1213
        %v1215 = vrot.slane %v1123, %v1214
        %v1216 = vsel %vm1152, %v1215, %v1211
        %vm1217 = vcmask 1041409
        %v1218 = vsel %vm1217, %v1162, %v1153
        %vm1219 = vcmask 1042434
        %v1220 = vsel %vm1219, %v1171, %v1218
        %vm1221 = vcmask 1043459
        %v1222 = vsel %vm1221, %v1180, %v1220
        %vm1223 = vcmask 1044484
        %v1224 = vsel %vm1223, %v1189, %v1222
        %vm1225 = vcmask 1045509
        %v1226 = vsel %vm1225, %v1198, %v1224
        %vm1227 = vcmask 1046534
        %v1228 = vsel %vm1227, %v1207, %v1226
        %vm1229 = vcmask 1047559
        %v1230 = vsel %vm1229, %v1216, %v1228
        %v1232 = vsel %vm1126, %v1230, -1e+30
        %vm1233 = vcmask 130048
        %v1234 = vsel %vm1233, %v1232, -inf
        %1235 = vmax.xlane.f32.xlu0 %v1234
        %v1236 = vpop.xlane.xlu0 %1235
        %v1237 = vsub.f32 %v1232, %v1236
        %v1238 = vmul.f32 %v1237, 1.442695
        %v1239 = vpow.pop %v1238
        %v1240 = vsel %vm1233, %v1239, 0.0
        %1241 = vadd.xlane.f32.xlu0 %v1240
        %v1242 = vpop.xlane.xlu0 %1241
        %v1243 = vrcp.pop %v1242
        %v1244 = vmul.f32 %v1239, %v1243
        %v1245 = vlaneseq
        %v1246 = vshrl.u32 %v1245, 7
        %v1247 = vsub.s32 0, %v1246
        %v1248 = vrot.slane %v1244, %v1247
        %1250 = vbcast.lane.b32.xlu0 %v1248, 256
        %v1251 = vpop.permute.xlu0 %1250
        %s1253 = sor.u32 256, 8
        %1254 = vbcast.lane.b32.xlu0 %v1248, %s1253
        %v1255 = vpop.permute.xlu0 %1254
        %v1256 = vlaneseq
        %v1257 = vshrl.u32 %v1256, 7
        %v1258 = vsub.s32 1, %v1257
        %v1259 = vrot.slane %v1244, %v1258
        %1261 = vbcast.lane.b32.xlu0 %v1259, 256
        %v1262 = vpop.permute.xlu0 %1261
        %s1264 = sor.u32 256, 8
        %1265 = vbcast.lane.b32.xlu0 %v1259, %s1264
        %v1266 = vpop.permute.xlu0 %1265
        %v1267 = vlaneseq
        %v1268 = vshrl.u32 %v1267, 7
        %v1269 = vsub.s32 2, %v1268
        %v1270 = vrot.slane %v1244, %v1269
        %1272 = vbcast.lane.b32.xlu0 %v1270, 256
        %v1273 = vpop.permute.xlu0 %1272
        %s1275 = sor.u32 256, 8
        %1276 = vbcast.lane.b32.xlu0 %v1270, %s1275
        %v1277 = vpop.permute.xlu0 %1276
        %v1278 = vlaneseq
        %v1279 = vshrl.u32 %v1278, 7
        %v1280 = vsub.s32 3, %v1279
        %v1281 = vrot.slane %v1244, %v1280
        %1283 = vbcast.lane.b32.xlu0 %v1281, 256
        %v1284 = vpop.permute.xlu0 %1283
        %s1286 = sor.u32 256, 8
        %1287 = vbcast.lane.b32.xlu0 %v1281, %s1286
        %v1288 = vpop.permute.xlu0 %1287
        %v1289 = vlaneseq
        %v1290 = vshrl.u32 %v1289, 7
        %v1291 = vsub.s32 4, %v1290
        %v1292 = vrot.slane %v1244, %v1291
        %1294 = vbcast.lane.b32.xlu0 %v1292, 256
        %v1295 = vpop.permute.xlu0 %1294
        %s1297 = sor.u32 256, 8
        %1298 = vbcast.lane.b32.xlu0 %v1292, %s1297
        %v1299 = vpop.permute.xlu0 %1298
        %v1300 = vlaneseq
        %v1301 = vshrl.u32 %v1300, 7
        %v1302 = vsub.s32 5, %v1301
        %v1303 = vrot.slane %v1244, %v1302
        %1305 = vbcast.lane.b32.xlu0 %v1303, 256
        %v1306 = vpop.permute.xlu0 %1305
        %s1308 = sor.u32 256, 8
        %1309 = vbcast.lane.b32.xlu0 %v1303, %s1308
        %v1310 = vpop.permute.xlu0 %1309
        %v1311 = vlaneseq
        %v1312 = vshrl.u32 %v1311, 7
        %v1313 = vsub.s32 6, %v1312
        %v1314 = vrot.slane %v1244, %v1313
        %1316 = vbcast.lane.b32.xlu0 %v1314, 256
        %v1317 = vpop.permute.xlu0 %1316
        %s1319 = sor.u32 256, 8
        %1320 = vbcast.lane.b32.xlu0 %v1314, %s1319
        %v1321 = vpop.permute.xlu0 %1320
        %v1322 = vlaneseq
        %v1323 = vshrl.u32 %v1322, 7
        %v1324 = vsub.s32 7, %v1323
        %v1325 = vrot.slane %v1244, %v1324
        %1327 = vbcast.lane.b32.xlu0 %v1325, 256
        %v1328 = vpop.permute.xlu0 %1327
        %s1330 = sor.u32 256, 8
        %1331 = vbcast.lane.b32.xlu0 %v1325, %s1330
        %v1332 = vpop.permute.xlu0 %1331
        %v1333 = vmul.f32 %v1251, %v924
        %v1334 = vmul.f32 %v1255, %v927
        %v1335 = vmul.f32 %v1262, %v932
        %v1336 = vmul.f32 %v1266, %v935
        %v1337 = vmul.f32 %v1273, %v940
        %v1338 = vmul.f32 %v1277, %v943
        %v1339 = vmul.f32 %v1284, %v948
        %v1340 = vmul.f32 %v1288, %v951
        %v1341 = vmul.f32 %v1295, %v956
        %v1342 = vmul.f32 %v1299, %v959
        %v1343 = vmul.f32 %v1306, %v964
        %v1344 = vmul.f32 %v1310, %v967
        %v1345 = vmul.f32 %v1317, %v972
        %v1346 = vmul.f32 %v1321, %v975
        %v1347 = vmul.f32 %v1328, %v980
        %v1348 = vmul.f32 %v1332, %v983
        %v1349 = vadd.f32 %v1333, %v1334
        %v1350 = vrot.slane %v1349, 4
        %v1351 = vadd.f32 %v1349, %v1350
        %v1352 = vrot.slane %v1351, 2
        %v1353 = vadd.f32 %v1351, %v1352
        %v1354 = vrot.slane %v1353, 1
        %v1355 = vadd.f32 %v1353, %v1354
        %v1356 = vadd.f32 %v1335, %v1336
        %v1357 = vrot.slane %v1356, 4
        %v1358 = vadd.f32 %v1356, %v1357
        %v1359 = vrot.slane %v1358, 2
        %v1360 = vadd.f32 %v1358, %v1359
        %v1361 = vrot.slane %v1360, 1
        %v1362 = vadd.f32 %v1360, %v1361
        %v1363 = vadd.f32 %v1337, %v1338
        %v1364 = vrot.slane %v1363, 4
        %v1365 = vadd.f32 %v1363, %v1364
        %v1366 = vrot.slane %v1365, 2
        %v1367 = vadd.f32 %v1365, %v1366
        %v1368 = vrot.slane %v1367, 1
        %v1369 = vadd.f32 %v1367, %v1368
        %v1370 = vadd.f32 %v1339, %v1340
        %v1371 = vrot.slane %v1370, 4
        %v1372 = vadd.f32 %v1370, %v1371
        %v1373 = vrot.slane %v1372, 2
        %v1374 = vadd.f32 %v1372, %v1373
        %v1375 = vrot.slane %v1374, 1
        %v1376 = vadd.f32 %v1374, %v1375
        %v1377 = vadd.f32 %v1341, %v1342
        %v1378 = vrot.slane %v1377, 4
        %v1379 = vadd.f32 %v1377, %v1378
        %v1380 = vrot.slane %v1379, 2
        %v1381 = vadd.f32 %v1379, %v1380
        %v1382 = vrot.slane %v1381, 1
        %v1383 = vadd.f32 %v1381, %v1382
        %v1384 = vadd.f32 %v1343, %v1344
        %v1385 = vrot.slane %v1384, 4
        %v1386 = vadd.f32 %v1384, %v1385
        %v1387 = vrot.slane %v1386, 2
        %v1388 = vadd.f32 %v1386, %v1387
        %v1389 = vrot.slane %v1388, 1
        %v1390 = vadd.f32 %v1388, %v1389
        %v1391 = vadd.f32 %v1345, %v1346
        %v1392 = vrot.slane %v1391, 4
        %v1393 = vadd.f32 %v1391, %v1392
        %v1394 = vrot.slane %v1393, 2
        %v1395 = vadd.f32 %v1393, %v1394
        %v1396 = vrot.slane %v1395, 1
        %v1397 = vadd.f32 %v1395, %v1396
        %v1398 = vadd.f32 %v1347, %v1348
        %v1399 = vrot.slane %v1398, 4
        %v1400 = vadd.f32 %v1398, %v1399
        %v1401 = vrot.slane %v1400, 2
        %v1402 = vadd.f32 %v1400, %v1401
        %v1403 = vrot.slane %v1402, 1
        %v1404 = vadd.f32 %v1402, %v1403
        %v1413 = vsel %vm1217, %v1362, %v1355
        %v1414 = vsel %vm1219, %v1369, %v1413
        %v1415 = vsel %vm1221, %v1376, %v1414
        %v1416 = vsel %vm1223, %v1383, %v1415
        %v1417 = vsel %vm1225, %v1390, %v1416
        %v1418 = vsel %vm1227, %v1397, %v1417
        %v1419 = vsel %vm1229, %v1404, %v1418
        %1421 = vst [vmem:[%s420] sm:$0xff] %v1419
        %1422 = vst.msk [vmem:[%s427] sm:$0xff] %vm1233, %v1244
        %s1423 = sand.u32 %s182, 1
        %s1424 = scalar_lea.sflag [#allocation4], %s1423
        %s1425 = sand.u32 %s182, 1
        %s1426 = smul.addr %s1425, 8
        %s1427 = scalar_lea.vmem [#allocation13], %s1426
        %s1428 = sand.u32 %s208, 1
        %s1429 = scalar_lea.sflag [#allocation15], %s1428
        %s1430 = sand.u32 %s208, 1
        %s1431 = smul.addr %s1430, 8
        %s1432 = scalar_lea.vmem [#allocation14], %s1431
        // Predicated region
        $region69: #{tpu_custom_call.1} parent=43 // pred_check
          %p1433 = pneg %p192
        $region70: #{tpu_custom_call.1} parent=43 // pred_check_branch
          %1435 = sbr.rel (%p1433) target = $region72
        $region71: #{tpu_custom_call.1} parent=43 // pred_region
          %s1437 = ssub.s32 128, 128
          %1438 = vsyncadd %s1424, %s1437
          %s1439 = smul.addr %s33, 128
          %s1440 = scalar_lea.hbm %s6, %s1439
          %s1442 = sshll.u32 %s1427, 4
          %s1443 = int_to_ptr.vmem [resolvable:$true] %s1442
          %1445 = dma.vmem_to_hbm [thread:$0]  %s1443, 128, %s1440, %s1424
        $region72: #{tpu_custom_call.1} parent=43 // pred_fallthru
          _
        // Predicated region
        $region73: #{tpu_custom_call.1} parent=43 // pred_check
          %p1446 = pneg %p218
        $region74: #{tpu_custom_call.1} parent=43 // pred_check_branch
          %1448 = sbr.rel (%p1446) target = $region76
        $region75: #{tpu_custom_call.1} parent=43 // pred_region
          %s1450 = ssub.s32 128, 128
          %1451 = vsyncadd %s1429, %s1450
          %s1452 = smul.addr %s33, 128
          %s1453 = scalar_lea.hbm %s7, %s1452
          %s1455 = sshll.u32 %s1432, 4
          %s1456 = int_to_ptr.vmem [resolvable:$true] %s1455
          %1458 = dma.vmem_to_hbm [thread:$0]  %s1456, 128, %s1453, %s1429
        $region76: #{tpu_custom_call.1} parent=43 // pred_fallthru
          _
      $region44: #{tpu_custom_call.1} parent=5 // pred_fallthru
        _
      %p1459 = scmp.le.s32.totalorder 2, %s28
      // Predicated region
      $region77: #{tpu_custom_call.1} parent=5 // pred_check
        %p1460 = pneg %p1459
      $region78: #{tpu_custom_call.1} parent=5 // pred_check_branch
        %1462 = sbr.rel (%p1460) target = $region80
      $region79: #{tpu_custom_call.1} parent=5 // pred_region
        %s1463 = ssub.s32 %s28, 2
        // Predicated region
        $region81: #{tpu_custom_call.1} parent=79 // pred_check
          %p1464 = pneg %p198
        $region82: #{tpu_custom_call.1} parent=79 // pred_check_branch
          %1466 = sbr.rel (%p1464) target = $region84
        $region83: #{tpu_custom_call.1} parent=79 // pred_region
          %s1467 = sand.u32 %s183, 1
          %s1468 = scalar_lea.sflag [#allocation4], %s1467
          %s1469 = sand.u32 %s183, 1
          %s1470 = smul.addr %s1469, 8
          %s1471 = scalar_lea.vmem [#allocation13], %s1470
          %1472 = dma.done %s1468, 128
        $region84: #{tpu_custom_call.1} parent=79 // pred_fallthru
          _
        // Predicated region
        $region85: #{tpu_custom_call.1} parent=79 // pred_check
          %p1473 = pneg %p224
        $region86: #{tpu_custom_call.1} parent=79 // pred_check_branch
          %1475 = sbr.rel (%p1473) target = $region88
        $region87: #{tpu_custom_call.1} parent=79 // pred_region
          %s1476 = sand.u32 %s209, 1
          %s1477 = scalar_lea.sflag [#allocation15], %s1476
          %s1478 = sand.u32 %s209, 1
          %s1479 = smul.addr %s1478, 8
          %s1480 = scalar_lea.vmem [#allocation14], %s1479
          %1481 = dma.done %s1477, 128
        $region88: #{tpu_custom_call.1} parent=79 // pred_fallthru
          _
      $region80: #{tpu_custom_call.1} parent=5 // pred_fallthru
        _
    $region6: #{tpu_custom_call.1} parent=1 // loop_footer
      %s32 = sadd.s32 1, %s28
    $region7: #{tpu_custom_call.1} parent=1 // loop_footer_branch
      %27 = sbr.rel target = $region3
    $region8: #{tpu_custom_call.1} parent=1 // loop_exit
      _
    %1482 = vsyncpa [#allocation3], 1
    %s1483 = scalar_lea.sflag [#allocation3], 1
    %1484 = vsyncpa %s1483, 1
    %1485 = vsyncpa [#allocation6], 1
    %s1486 = scalar_lea.sflag [#allocation6], 1
    %1487 = vsyncpa %s1486, 1
    %1488 = vsyncpa [#allocation9], 1
    %1489 = vsyncpa [#allocation12], 1
    %1490 = vsyncpa [#allocation4], 1
    %s1491 = scalar_lea.sflag [#allocation4], 1
    %1492 = vsyncpa %s1491, 1
    %1493 = vsyncpa [#allocation15], 1
    %s1494 = scalar_lea.sflag [#allocation15], 1
    %1495 = vsyncpa %s1494, 1

</llo_original>
